<compile_context>
chip_gen: v6e
topology: v6e:2x2x1
jax: 0.10.0
libtpu: 0.0.40
codegen_flags: <defaults>
</compile_context>

<pallas_src>
import functools

import jax
import jax.numpy as jnp
from jax import lax
from jax.experimental import pallas as pl
from jax.experimental.pallas import tpu as pltpu

LANES = 128


def _round_up(x, m):
    return -(-x // m) * m


def _sublane_multiple(dtype):
    # Min sublane tile: f32 -> 8, bf16/f16 -> 16, int8/fp8 -> 32.
    return {1: 32, 2: 16}.get(jnp.dtype(dtype).itemsize, 8)


def _default_block_rows():
    # v5e/v6e have 128 MiB VMEM -> afford bigger tiles; v7x (64 MiB) stays at 1024.
    try:
        info = pltpu.get_tpu_info()
        if int(getattr(info, "vmem_capacity_bytes", 0)) >= (100 << 20):
            return 2048
    except Exception:
        pass
    return 1024


def _make_kernel(t_stages, rows, br, mask_needed):
    def kernel(gt_ref, p_ref, loss_ref, smax_ref):
        # gt_ref: (br, 128) input dtype; p_ref: (t_stages, br, 128) input dtype
        gt = gt_ref[...].astype(jnp.float32)  # one f32 tile, live across stages

        if mask_needed:
            base = pl.program_id(0) * br
            row_ids = lax.broadcasted_iota(jnp.int32, (br, 1), 0) + base
            mask = row_ids < rows  # valid-row mask for the ragged last block
        else:
            mask = None

        acc = jnp.zeros((br, LANES), jnp.float32)
        smax = None
        # Static unroll over the small stage axis: one predicate slice live at
        # a time; running max stays in the native input dtype.
        for t in range(t_stages):
            p_t = p_ref[t]                                    # (br, 128) native
            smax = p_t if smax is None else jnp.maximum(smax, p_t)
            d = p_t.astype(jnp.float32) - gt
            if mask is not None:
                d = jnp.where(mask, d, 0.0)                   # kill OOB garbage rows
            acc = acc + d * d

        # Fold (br,128) -> (8,128) with sublane-aligned slice adds: pure VALU,
        # no cross-sublane XLU reduce, keeps the partial-loss store unmasked.
        part = acc[0:8, :]
        for j in range(1, br // 8):
            part = part + acc[8 * j:8 * (j + 1), :]
        loss_ref[...] = part.reshape(1, 8, LANES)
        smax_ref[...] = smax                                  # native dtype

    return kernel


@functools.partial(jax.jit, static_argnames=("block_rows",))
def _loss_conf_impl(gt, p, *, block_rows):
    n, c, h, w = gt.shape
    t_stages = p.shape[0]
    total = n * c * h * w

    sub = max(_sublane_multiple(gt.dtype), _sublane_multiple(p.dtype))

    gt_flat = gt.reshape(-1)
    p_flat = p.reshape(t_stages, -1)

    rows = (total + LANES - 1) // LANES
    if total % LANES == 0 and rows >= sub:
        # Zero-copy path (common case): no wrapper-side padding at all.
        rows_p = rows
    else:
        # TODO(synk): lane-unaligned / sub-tile-sized inputs still take one
        # small padding copy here (pad only to the lane/sublane boundary).
        rows_p = max(_round_up(rows, sub), sub)
        pad = rows_p * LANES - total
        gt_flat = jnp.pad(gt_flat, (0, pad))
        p_flat = jnp.pad(p_flat, ((0, 0), (0, pad)))

    gt2 = gt_flat.reshape(rows_p, LANES)
    p2 = p_flat.reshape(t_stages, rows_p, LANES)

    br = min(_round_up(block_rows, sub), (rows_p // sub) * sub)
    num_blocks = (rows_p + br - 1) // br
    mask_needed = (rows_p % br) != 0

    # VMEM budget: double-buffered gt / predicate / smax tiles (native dtype),
    # the tiny loss-partial tile, plus in-kernel f32 temporaries.
    gt_b = jnp.dtype(gt.dtype).itemsize
    p_b = jnp.dtype(p.dtype).itemsize
    tile = br * LANES
    vmem = (2 * tile * gt_b                 # gt input (double-buffered)
            + 2 * t_stages * tile * p_b     # predicate input
            + 2 * tile * p_b                # smax output
            + 2 * 8 * LANES * 4             # loss partial output
            + 5 * tile * 4)                 # f32 temporaries (gt, p_t, d, acc, slack)
    vmem_limit = int(min(max(vmem + (2 << 20), 16 << 20), 48 << 20))

    cost = pl.CostEstimate(
        flops=4 * t_stages * total,
        transcendentals=0,
        bytes_accessed=(t_stages * total * p_b     # predicate read
                        + total * gt_b             # ground truth read
                        + total * p_b              # smax write
                        + num_blocks * 8 * LANES * 4),
    )

    loss_part, smax = pl.pallas_call(
        _make_kernel(t_stages, rows_p, br, mask_needed),
        out_shape=(
            jax.ShapeDtypeStruct((num_blocks, 8, LANES), jnp.float32),  # partials
            jax.ShapeDtypeStruct((rows_p, LANES), p.dtype),             # max map
        ),
        grid=(num_blocks,),
        in_specs=[
            pl.BlockSpec((br, LANES), lambda i: (i, 0)),
            pl.BlockSpec((t_stages, br, LANES), lambda i: (0, i, 0)),
        ],
        out_specs=(
            pl.BlockSpec((1, 8, LANES), lambda i: (i, 0, 0)),
            pl.BlockSpec((br, LANES), lambda i: (i, 0)),
        ),
        compiler_params=pltpu.CompilerParams(
            dimension_semantics=("parallel",),
            vmem_limit_bytes=vmem_limit,
        ),
        cost_estimate=cost,
    )(gt2, p2)

    loss = jnp.sum(loss_part)  # pairwise/tree sum of f32 partials
    s_map = smax.reshape(-1)[:total].reshape(n, c, h, w)
    return loss, s_map


def loss_conf_forward(ground_truth, predicate, *, block_rows=None):
    """ground_truth: (N, C, H, W); predicate: (T, N, C, H, W).
    Returns (scalar loss = sum_t ||S_t - S*||^2, S = max_t S_t of shape NCHW)."""
    if block_rows is None:
        block_rows = _default_block_rows()
    return _loss_conf_impl(ground_truth, predicate, block_rows=int(block_rows))


if __name__ == "__main__":
    # Small deterministic example: N=2, C=4, H=16, W=16, T=3 stages.
    key = jax.random.PRNGKey(0)
    k_gt, k_p = jax.random.split(key)
    N, C, H, W, T = 2, 4, 16, 16, 3

    ground_truth = jax.random.uniform(k_gt, (N, C, H, W), dtype=jnp.float32)
    predicate = jax.random.uniform(k_p, (T, N, C, H, W), dtype=jnp.float32)

    loss, s_map = loss_conf_forward(ground_truth, predicate)
    loss = jax.block_until_ready(loss)
    s_map = jax.block_until_ready(s_map)

    # Pure-JAX reference check.
    ref_loss = jnp.sum((predicate - ground_truth[None]) ** 2)
    ref_s = jnp.max(predicate, axis=0)
    assert jnp.allclose(loss, ref_loss, rtol=1e-5, atol=1e-5), (loss, ref_loss)
    assert jnp.allclose(s_map, ref_s, rtol=1e-6, atol=1e-6)

    print("KERNEL_OK")
</pallas_src>

<mosaic_0001>
module attributes {stable_mosaic.version = 11 : i64} {
  func.func @kernel(%arg0: i32, %arg1: memref<16x128xf32, #tpu.memory_space<vmem>>, %arg2: memref<3x16x128xf32, #tpu.memory_space<vmem>>, %arg3: memref<1x8x128xf32, #tpu.memory_space<vmem>>, %arg4: memref<16x128xf32, #tpu.memory_space<vmem>>) attributes {dimension_semantics = [#tpu.dimension_semantics<parallel>], iteration_bounds = array<i64: 1>, scalar_prefetch = 0 : i64, scratch_operands = 0 : i64, tpu.core_type = #tpu.core_type<tc>, window_params = [{transform_indices = @transform_0, window_bounds = array<i64: 16, 128>}, {transform_indices = @transform_1, window_bounds = array<i64: 3, 16, 128>}, {transform_indices = @transform_2, window_bounds = array<i64: 1, 8, 128>}, {transform_indices = @transform_3, window_bounds = array<i64: 16, 128>}]} {
    %c0 = arith.constant 0 : index
    %c0_0 = arith.constant 0 : index
    %0 = vector.load %arg1[%c0, %c0_0] : memref<16x128xf32, #tpu.memory_space<vmem>>, vector<16x128xf32>
    %cst = arith.constant 0.000000e+00 : f32
    %1 = vector.broadcast %cst : f32 to vector<16x128xf32>
    %c0_1 = arith.constant 0 : index
    %c0_2 = arith.constant 0 : index
    %c0_3 = arith.constant 0 : index
    %2 = vector.load %arg2[%c0_1, %c0_2, %c0_3] : memref<3x16x128xf32, #tpu.memory_space<vmem>>, vector<1x16x128xf32>
    %3 = vector.shape_cast %2 : vector<1x16x128xf32> to vector<16x128xf32>
    %4 = arith.subf %3, %0 : vector<16x128xf32>
    %5 = arith.mulf %4, %4 : vector<16x128xf32>
    %6 = arith.addf %1, %5 : vector<16x128xf32>
    %c1 = arith.constant 1 : index
    %c0_4 = arith.constant 0 : index
    %c0_5 = arith.constant 0 : index
    %7 = vector.load %arg2[%c1, %c0_4, %c0_5] : memref<3x16x128xf32, #tpu.memory_space<vmem>>, vector<1x16x128xf32>
    %8 = vector.shape_cast %7 : vector<1x16x128xf32> to vector<16x128xf32>
    %9 = arith.maximumf %3, %8 : vector<16x128xf32>
    %10 = arith.subf %8, %0 : vector<16x128xf32>
    %11 = arith.mulf %10, %10 : vector<16x128xf32>
    %12 = arith.addf %6, %11 : vector<16x128xf32>
    %c2 = arith.constant 2 : index
    %c0_6 = arith.constant 0 : index
    %c0_7 = arith.constant 0 : index
    %13 = vector.load %arg2[%c2, %c0_6, %c0_7] : memref<3x16x128xf32, #tpu.memory_space<vmem>>, vector<1x16x128xf32>
    %14 = vector.shape_cast %13 : vector<1x16x128xf32> to vector<16x128xf32>
    %15 = arith.maximumf %9, %14 : vector<16x128xf32>
    %16 = arith.subf %14, %0 : vector<16x128xf32>
    %17 = arith.mulf %16, %16 : vector<16x128xf32>
    %18 = arith.addf %12, %17 : vector<16x128xf32>
    %19 = vector.extract_strided_slice %18 {offsets = [0, 0], sizes = [8, 128], strides = [1, 1]} : vector<16x128xf32> to vector<8x128xf32>
    %20 = vector.extract_strided_slice %18 {offsets = [8, 0], sizes = [8, 128], strides = [1, 1]} : vector<16x128xf32> to vector<8x128xf32>
    %21 = arith.addf %19, %20 : vector<8x128xf32>
    %22 = vector.shape_cast %21 : vector<8x128xf32> to vector<1x8x128xf32>
    %c0_8 = arith.constant 0 : index
    %c0_9 = arith.constant 0 : index
    %c0_10 = arith.constant 0 : index
    %23 = vector.load %arg3[%c0_8, %c0_9, %c0_10] : memref<1x8x128xf32, #tpu.memory_space<vmem>>, vector<1x8x128xf32>
    tpu.vector_store %arg3[%c0_8, %c0_9, %c0_10], %22 {strides = array<i32>} : memref<1x8x128xf32, #tpu.memory_space<vmem>>, vector<1x8x128xf32>,
    %c0_11 = arith.constant 0 : index
    %c0_12 = arith.constant 0 : index
    %24 = vector.load %arg4[%c0_11, %c0_12] : memref<16x128xf32, #tpu.memory_space<vmem>>, vector<16x128xf32>
    tpu.vector_store %arg4[%c0_11, %c0_12], %15 {strides = array<i32>} : memref<16x128xf32, #tpu.memory_space<vmem>>, vector<16x128xf32>,
    return
  }
  func.func @transform_0(%arg0: i32) -> (i32, i32) {
    %c0_i32 = arith.constant 0 : i32
    %c0_i32_0 = arith.constant 0 : i32
    return %arg0, %c0_i32 : i32, i32
  }
  func.func @transform_1(%arg0: i32) -> (i32, i32, i32) {
    %c0_i32 = arith.constant 0 : i32
    %c0_i32_0 = arith.constant 0 : i32
    %c0_i32_1 = arith.constant 0 : i32
    return %c0_i32, %arg0, %c0_i32_0 : i32, i32, i32
  }
  func.func @transform_2(%arg0: i32) -> (i32, i32, i32) {
    %c0_i32 = arith.constant 0 : i32
    %c0_i32_0 = arith.constant 0 : i32
    %c0_i32_1 = arith.constant 0 : i32
    return %arg0, %c0_i32, %c0_i32_0 : i32, i32, i32
  }
  func.func @transform_3(%arg0: i32) -> (i32, i32) {
    %c0_i32 = arith.constant 0 : i32
    %c0_i32_0 = arith.constant 0 : i32
    return %arg0, %c0_i32 : i32, i32
  }
}

</mosaic_0001>

<llo_original>
// kernel: _loss_conf_impl.1
$region0: #{_loss_conf_impl.1}
  #allocation0 [shape = 'u32[]', space=smem, size = 0x4, offset = 0x4, fixed_abs, tag = 'smem constant byte address 0x4 - core index']
  #allocation1 [shape = 'u32[144,128]{1,0:T(1,128)}', space=vmem, size = 0x12000, scoped, tag = 'internal scratch']
  %s0 = inlined_call_operand.vmem [shape: f32[16,128], index: 0, kind: input, shape index: {}]
  %s1 = inlined_call_operand.vmem [shape: f32[3,16,128], index: 1, kind: input, shape index: {}]
  %s2 = inlined_call_operand.vmem [shape: f32[1,8,128], index: 2, kind: output, shape index: {0}]
  %s3 = inlined_call_operand.vmem [shape: f32[16,128], index: 3, kind: output, shape index: {1}]
  %4 = xla_tuple %s2, %s3
  %s5 = sld [smem:[#allocation0]]
  $region26: #{_loss_conf_impl.1} parent=0
    _
  %s7 = ssub.s32 1, %s5
  %s8 = scalar_select 0, %s7, %s5
  // Predicated region
  $region2: #{_loss_conf_impl.1} parent=0 // pred_check
    _
  $region3: #{_loss_conf_impl.1} parent=0 // pred_check_branch
    %10 = sbr.rel (0) target = $region5
  $region4: #{_loss_conf_impl.1} parent=0 // pred_region
    _
  $region5: #{_loss_conf_impl.1} parent=0 // pred_fallthru
    _
  // Predicated region
  $region6: #{_loss_conf_impl.1} parent=0 // pred_check
    _
  $region7: #{_loss_conf_impl.1} parent=0 // pred_check_branch
    %12 = sbr.rel (0) target = $region9
  $region8: #{_loss_conf_impl.1} parent=0 // pred_region
    _
  $region9: #{_loss_conf_impl.1} parent=0 // pred_fallthru
    _
  %v13 = vld [vmem:[%s0] sm:$0xff]
  %v14 = vld [vmem:[%s0 + $0x8] sm:$0xff]
  %v15 = vld [vmem:[%s1] sm:$0xff]
  %v16 = vld [vmem:[%s1 + $0x8] sm:$0xff]
  %v17 = vsub.f32 %v15, %v13
  %v18 = vsub.f32 %v16, %v14
  %v19 = vmul.f32 %v17, %v17
  %v20 = vmul.f32 %v18, %v18
  %v21 = vadd.f32 %v19, 0.0
  %v22 = vadd.f32 %v20, 0.0
  %s23 = scalar_lea.vmem %s1, 16
  %v24 = vld [vmem:[%s23] sm:$0xff]
  %v25 = vld [vmem:[%s23 + $0x8] sm:$0xff]
  %v26 = vmax.f32 %v15, %v24
  %v27 = vmax.f32 %v16, %v25
  %v28 = vsub.f32 %v24, %v13
  %v29 = vsub.f32 %v25, %v14
  %v30 = vmul.f32 %v28, %v28
  %v31 = vmul.f32 %v29, %v29
  %v32 = vadd.f32 %v21, %v30
  %v33 = vadd.f32 %v22, %v31
  %s34 = scalar_lea.vmem %s1, 32
  %v35 = vld [vmem:[%s34] sm:$0xff]
  %v36 = vld [vmem:[%s34 + $0x8] sm:$0xff]
  %v37 = vmax.f32 %v26, %v35
  %v38 = vmax.f32 %v27, %v36
  %v39 = vsub.f32 %v35, %v13
  %v40 = vsub.f32 %v36, %v14
  %v41 = vmul.f32 %v39, %v39
  %v42 = vmul.f32 %v40, %v40
  %v43 = vadd.f32 %v32, %v41
  %v44 = vadd.f32 %v33, %v42
  %v45 = vadd.f32 %v43, %v44
  %46 = vst [vmem:[%s2] sm:$0xff] %v45
  %47 = vst [vmem:[%s3] sm:$0xff] %v37
  %48 = vst [vmem:[%s3 + $0x8] sm:$0xff] %v38
  // Predicated region
  $region10: #{_loss_conf_impl.1} parent=0 // pred_check
    _
  $region11: #{_loss_conf_impl.1} parent=0 // pred_check_branch
    %50 = sbr.rel (0) target = $region13
  $region12: #{_loss_conf_impl.1} parent=0 // pred_region
    _
  $region13: #{_loss_conf_impl.1} parent=0 // pred_fallthru
    _
  // Predicated region
  $region14: #{_loss_conf_impl.1} parent=0 // pred_check
    _
  $region15: #{_loss_conf_impl.1} parent=0 // pred_check_branch
    %52 = sbr.rel (0) target = $region17
  $region16: #{_loss_conf_impl.1} parent=0 // pred_region
    _
  $region17: #{_loss_conf_impl.1} parent=0 // pred_fallthru
    _
  // Predicated region
  $region18: #{_loss_conf_impl.1} parent=0 // pred_check
    _
  $region19: #{_loss_conf_impl.1} parent=0 // pred_check_branch
    %54 = sbr.rel (0) target = $region21
  $region20: #{_loss_conf_impl.1} parent=0 // pred_region
    _
  $region21: #{_loss_conf_impl.1} parent=0 // pred_fallthru
    _
  // Predicated region
  $region22: #{_loss_conf_impl.1} parent=0 // pred_check
    _
  $region23: #{_loss_conf_impl.1} parent=0 // pred_check_branch
    %56 = sbr.rel (0) target = $region25
  $region24: #{_loss_conf_impl.1} parent=0 // pred_region
    _
  $region25: #{_loss_conf_impl.1} parent=0 // pred_fallthru
    _

</llo_original>
